<compile_context>
chip_gen: v5e
topology: v5e:2x2
jax: 0.10.0
libtpu: 0.0.40
codegen_flags: <defaults>
</compile_context>

<pallas_src>
import functools
import math

import jax
import jax.numpy as jnp
import numpy as np
from jax import lax
from jax.experimental import pallas as pl
from jax.experimental.pallas import tpu as pltpu


def _noise_embedding_kernel(x_ref, fb2_ref, w1_ref, b1_ref, w2_ref, b2_ref,
                            o_ref, *, half):
    # x_ref : (TB, 1)    f32 noise levels (padded batch tile)
    # fb2_ref: (1, IN)   f32, 2*pi * concat([b, b])
    # w1_ref : (IN, OUT) bf16 (transposed torch linear_1 weight)
    # b1_ref : (1, OUT)  f32
    # w2_ref : (OUT, OUT) bf16
    # b2_ref : (1, OUT)  f32
    x = x_ref[...]                                    # (TB, 1)
    phi = x * fb2_ref[...]                            # (TB, IN) broadcast, f32

    # f = [sin(phi[:, :H]), cos(phi[:, H:])] as one lane-dense (TB, IN) slab.
    lane = lax.broadcasted_iota(jnp.int32, phi.shape, 1)
    f = jnp.where(lane < half, jnp.sin(phi), jnp.cos(phi))   # f32

    # ---- linear_1 + SiLU (single K=IN matmul, bf16 operands, f32 accum) ----
    h = jnp.dot(f.astype(jnp.bfloat16), w1_ref[...],
                preferred_element_type=jnp.float32) + b1_ref[...]
    h = h * pl.reciprocal(1.0 + jnp.exp(-h), approx=True)    # SiLU

    # ---- linear_2 + SiLU ----
    y = jnp.dot(h.astype(jnp.bfloat16), w2_ref[...],
                preferred_element_type=jnp.float32) + b2_ref[...]
    y = y * pl.reciprocal(1.0 + jnp.exp(-y), approx=True)

    o_ref[...] = y


def prepare_params(params):
    """One-time preprocessing of torch-layout params into kernel-ready arrays."""
    b = jnp.asarray(params["b"], jnp.float32).reshape(-1)          # (H,)
    # 2*pi folded in; duplicated so sin/cos halves share one lane-dense phi.
    fb2 = (2.0 * math.pi) * jnp.concatenate([b, b]).reshape(1, -1)  # (1, IN) f32
    w1t = jnp.asarray(params["w1"], jnp.float32).T.astype(jnp.bfloat16)  # (IN, OUT)
    b1 = jnp.asarray(params["b1"], jnp.float32).reshape(1, -1)
    w2t = jnp.asarray(params["w2"], jnp.float32).T.astype(jnp.bfloat16)  # (OUT, OUT)
    b2 = jnp.asarray(params["b2"], jnp.float32).reshape(1, -1)
    return {"fb2": fb2, "w1t": w1t, "b1": b1, "w2t": w2t, "b2": b2,
            "half": int(b.shape[0])}


def noise_embedding_pallas(x, prepped, *, tile_b=256):
    """x: any shape (flattened like torch's x.view(-1)).  Returns (B, out_channels) f32."""
    fb2, w1t, b1, w2t, b2 = (prepped["fb2"], prepped["w1t"], prepped["b1"],
                             prepped["w2t"], prepped["b2"])
    half = prepped["half"]
    in_ch = fb2.shape[1]
    out_ch = w2t.shape[1]

    x = jnp.asarray(x, jnp.float32).reshape(-1, 1)
    B = x.shape[0]

    # Pick the batch tile: whole (sublane-padded) batch if small, else tile_b.
    Bp8 = ((B + 7) // 8) * 8
    if Bp8 <= tile_b:
        TB = Bp8
    else:
        TB = tile_b
    Bp = ((B + TB - 1) // TB) * TB
    xp = jnp.pad(x, ((0, Bp - B), (0, 0)))            # cheap pad, only hot-path prep

    grid = (Bp // TB,)

    grid_spec = pltpu.PrefetchScalarGridSpec(
        num_scalar_prefetch=0,
        grid=grid,
        in_specs=[
            pl.BlockSpec((TB, 1), lambda i: (i, 0)),          # x: tiled over batch
            pl.BlockSpec((1, in_ch), lambda i: (0, 0)),       # fb2: resident
            pl.BlockSpec((in_ch, out_ch), lambda i: (0, 0)),  # w1: resident
            pl.BlockSpec((1, out_ch), lambda i: (0, 0)),      # b1: resident
            pl.BlockSpec((out_ch, out_ch), lambda i: (0, 0)), # w2: resident
            pl.BlockSpec((1, out_ch), lambda i: (0, 0)),      # b2: resident
        ],
        out_specs=pl.BlockSpec((TB, out_ch), lambda i: (i, 0)),
    )

    out = pl.pallas_call(
        functools.partial(_noise_embedding_kernel, half=half),
        out_shape=jax.ShapeDtypeStruct((Bp, out_ch), jnp.float32),
        grid_spec=grid_spec,
        compiler_params=pltpu.CompilerParams(
            # batch tiles are independent -> megacore-shardable on v7x
            dimension_semantics=("parallel",),
        ),
    )(xp, fb2, w1t, b1, w2t, b2)

    # NOTE: rows B..Bp contain garbage from the pad; never read them downstream.
    return out[:B]


def noise_embedding_reference(x, params):
    """Plain-JAX mirror of the PyTorch forward (full f32) for a correctness check."""
    x = jnp.asarray(x, jnp.float32).reshape(-1)
    phi = 2.0 * math.pi * jnp.outer(x, params["b"])
    f = jnp.concatenate([jnp.sin(phi), jnp.cos(phi)], axis=-1)
    h = f @ params["w1"].T + params["b1"]
    h = jax.nn.silu(h)
    y = h @ params["w2"].T + params["b2"]
    return jax.nn.silu(y)


def make_params(key, in_channels, out_channels, scale=16.0):
    ks = jax.random.split(key, 5)
    lim1 = 1.0 / math.sqrt(in_channels)
    lim2 = 1.0 / math.sqrt(out_channels)
    return {
        # GaussianFourierProjection buffer
        "b": scale * jax.random.normal(ks[0], (in_channels // 2,), jnp.float32),
        # linear_1: (out, in) like torch
        "w1": lim1 * jax.random.normal(ks[1], (out_channels, in_channels), jnp.float32),
        "b1": lim1 * jax.random.normal(ks[2], (out_channels,), jnp.float32),
        # linear_2: (out, out)
        "w2": lim2 * jax.random.normal(ks[3], (out_channels, out_channels), jnp.float32),
        "b2": lim2 * jax.random.normal(ks[4], (out_channels,), jnp.float32),
    }


if __name__ == "__main__":
    key = jax.random.PRNGKey(0)
    k_x, k_p = jax.random.split(key)

    B, in_channels, out_channels = 8, 128, 256        # small, TPU-tile friendly
    x = jax.random.uniform(k_x, (B,), jnp.float32, minval=0.01, maxval=1.0)
    params = make_params(k_p, in_channels, out_channels)

    prepped = prepare_params(params)                  # one-time weight prep

    out = noise_embedding_pallas(x, prepped)
    out = jax.block_until_ready(out)

    ref = jax.block_until_ready(noise_embedding_reference(x, params))
    # bf16 weights + approx reciprocal -> slightly looser tolerance than pure f32.
    np.testing.assert_allclose(np.asarray(out), np.asarray(ref), rtol=1e-2, atol=1e-2)

    print("KERNEL_OK")
</pallas_src>

<mosaic_0001>
module attributes {stable_mosaic.version = 11 : i64} {
  func.func @_noise_embedding_kernel(%arg0: i32, %arg1: memref<8x1xf32, #tpu.memory_space<vmem>>, %arg2: memref<1x128xf32, #tpu.memory_space<vmem>>, %arg3: memref<128x256xbf16, #tpu.memory_space<vmem>>, %arg4: memref<1x256xf32, #tpu.memory_space<vmem>>, %arg5: memref<256x256xbf16, #tpu.memory_space<vmem>>, %arg6: memref<1x256xf32, #tpu.memory_space<vmem>>, %arg7: memref<8x256xf32, #tpu.memory_space<vmem>>) attributes {dimension_semantics = [#tpu.dimension_semantics<parallel>], iteration_bounds = array<i64: 1>, scalar_prefetch = 0 : i64, scratch_operands = 0 : i64, tpu.core_type = #tpu.core_type<tc>, window_params = [{transform_indices = @transform_0, window_bounds = array<i64: 8, 1>}, {pipeline_mode = #tpu.pipeline_mode<synchronous>, transform_indices = @transform_1, window_bounds = array<i64: 1, 128>}, {pipeline_mode = #tpu.pipeline_mode<synchronous>, transform_indices = @transform_2, window_bounds = array<i64: 128, 256>}, {pipeline_mode = #tpu.pipeline_mode<synchronous>, transform_indices = @transform_3, window_bounds = array<i64: 1, 256>}, {pipeline_mode = #tpu.pipeline_mode<synchronous>, transform_indices = @transform_4, window_bounds = array<i64: 256, 256>}, {pipeline_mode = #tpu.pipeline_mode<synchronous>, transform_indices = @transform_5, window_bounds = array<i64: 1, 256>}, {transform_indices = @transform_6, window_bounds = array<i64: 8, 256>}]} {
    %c0 = arith.constant 0 : index
    %c0_0 = arith.constant 0 : index
    %0 = vector.load %arg1[%c0, %c0_0] : memref<8x1xf32, #tpu.memory_space<vmem>>, vector<8x1xf32>
    %c0_1 = arith.constant 0 : index
    %c0_2 = arith.constant 0 : index
    %1 = vector.load %arg2[%c0_1, %c0_2] : memref<1x128xf32, #tpu.memory_space<vmem>>, vector<1x128xf32>
    %2 = vector.broadcast %0 : vector<8x1xf32> to vector<8x128xf32>
    %3 = vector.broadcast %1 : vector<1x128xf32> to vector<8x128xf32>
    %4 = arith.mulf %2, %3 : vector<8x128xf32>
    %5 = tpu.iota {dimensions = array<i32: 1>} : vector<8x128xi32>
    %c64_i32 = arith.constant 64 : i32
    %6 = vector.broadcast %c64_i32 : i32 to vector<8x128xi32>
    %7 = arith.cmpi slt, %5, %6 : vector<8x128xi32>
    %8 = math.sin %4 : vector<8x128xf32>
    %9 = math.cos %4 : vector<8x128xf32>
    %10 = arith.select %7, %8, %9 : vector<8x128xi1>, vector<8x128xf32>
    %11 = arith.truncf %10 : vector<8x128xf32> to vector<8x128xbf16>
    %c0_3 = arith.constant 0 : index
    %c0_4 = arith.constant 0 : index
    %12 = vector.load %arg3[%c0_3, %c0_4] : memref<128x256xbf16, #tpu.memory_space<vmem>>, vector<128x256xbf16>
    %cst = arith.constant dense<0.000000e+00> : vector<8x256xf32>
    %13 = tpu.matmul %11, %12, %cst {dimension_numbers = #tpu.dot_dimension_numbers<[1], [0], [0], [1], [0, 0, 1, 1], [], []>} : vector<8x128xbf16>, vector<128x256xbf16>, vector<8x256xf32> -> vector<8x256xf32>
    %c0_5 = arith.constant 0 : index
    %c0_6 = arith.constant 0 : index
    %14 = vector.load %arg4[%c0_5, %c0_6] : memref<1x256xf32, #tpu.memory_space<vmem>>, vector<1x256xf32>
    %15 = vector.broadcast %14 : vector<1x256xf32> to vector<8x256xf32>
    %16 = arith.addf %13, %15 : vector<8x256xf32>
    %cst_7 = arith.constant 0.000000e+00 : f32
    %17 = vector.broadcast %cst_7 : f32 to vector<8x256xf32>
    %18 = arith.subf %17, %16 : vector<8x256xf32>
    %19 = math.exp %18 : vector<8x256xf32>
    %cst_8 = arith.constant 1.000000e+00 : f32
    %20 = vector.broadcast %cst_8 : f32 to vector<8x256xf32>
    %21 = arith.addf %20, %19 : vector<8x256xf32>
    %22 = tpu.reciprocal %21 {approx = true} : vector<8x256xf32> -> vector<8x256xf32>
    %23 = arith.mulf %16, %22 : vector<8x256xf32>
    %24 = arith.truncf %23 : vector<8x256xf32> to vector<8x256xbf16>
    %c0_9 = arith.constant 0 : index
    %c0_10 = arith.constant 0 : index
    %25 = vector.load %arg5[%c0_9, %c0_10] : memref<256x256xbf16, #tpu.memory_space<vmem>>, vector<256x256xbf16>
    %cst_11 = arith.constant dense<0.000000e+00> : vector<8x256xf32>
    %26 = tpu.matmul %24, %25, %cst_11 {dimension_numbers = #tpu.dot_dimension_numbers<[1], [0], [0], [1], [0, 0, 1, 1], [], []>} : vector<8x256xbf16>, vector<256x256xbf16>, vector<8x256xf32> -> vector<8x256xf32>
    %c0_12 = arith.constant 0 : index
    %c0_13 = arith.constant 0 : index
    %27 = vector.load %arg6[%c0_12, %c0_13] : memref<1x256xf32, #tpu.memory_space<vmem>>, vector<1x256xf32>
    %28 = vector.broadcast %27 : vector<1x256xf32> to vector<8x256xf32>
    %29 = arith.addf %26, %28 : vector<8x256xf32>
    %cst_14 = arith.constant 0.000000e+00 : f32
    %30 = vector.broadcast %cst_14 : f32 to vector<8x256xf32>
    %31 = arith.subf %30, %29 : vector<8x256xf32>
    %32 = math.exp %31 : vector<8x256xf32>
    %cst_15 = arith.constant 1.000000e+00 : f32
    %33 = vector.broadcast %cst_15 : f32 to vector<8x256xf32>
    %34 = arith.addf %33, %32 : vector<8x256xf32>
    %35 = tpu.reciprocal %34 {approx = true} : vector<8x256xf32> -> vector<8x256xf32>
    %36 = arith.mulf %29, %35 : vector<8x256xf32>
    %c0_16 = arith.constant 0 : index
    %c0_17 = arith.constant 0 : index
    %37 = vector.load %arg7[%c0_16, %c0_17] : memref<8x256xf32, #tpu.memory_space<vmem>>, vector<8x256xf32>
    tpu.vector_store %arg7[%c0_16, %c0_17], %36 {strides = array<i32>} : memref<8x256xf32, #tpu.memory_space<vmem>>, vector<8x256xf32>,
    return
  }
  func.func @transform_0(%arg0: i32) -> (i32, i32) {
    %c0_i32 = arith.constant 0 : i32
    %c0_i32_0 = arith.constant 0 : i32
    return %arg0, %c0_i32 : i32, i32
  }
  func.func @transform_1(%arg0: i32) -> (i32, i32) {
    %c0_i32 = arith.constant 0 : i32
    %c0_i32_0 = arith.constant 0 : i32
    %c0_i32_1 = arith.constant 0 : i32
    return %c0_i32, %c0_i32_0 : i32, i32
  }
  func.func @transform_2(%arg0: i32) -> (i32, i32) {
    %c0_i32 = arith.constant 0 : i32
    %c0_i32_0 = arith.constant 0 : i32
    %c0_i32_1 = arith.constant 0 : i32
    return %c0_i32, %c0_i32_0 : i32, i32
  }
  func.func @transform_3(%arg0: i32) -> (i32, i32) {
    %c0_i32 = arith.constant 0 : i32
    %c0_i32_0 = arith.constant 0 : i32
    %c0_i32_1 = arith.constant 0 : i32
    return %c0_i32, %c0_i32_0 : i32, i32
  }
  func.func @transform_4(%arg0: i32) -> (i32, i32) {
    %c0_i32 = arith.constant 0 : i32
    %c0_i32_0 = arith.constant 0 : i32
    %c0_i32_1 = arith.constant 0 : i32
    return %c0_i32, %c0_i32_0 : i32, i32
  }
  func.func @transform_5(%arg0: i32) -> (i32, i32) {
    %c0_i32 = arith.constant 0 : i32
    %c0_i32_0 = arith.constant 0 : i32
    %c0_i32_1 = arith.constant 0 : i32
    return %c0_i32, %c0_i32_0 : i32, i32
  }
  func.func @transform_6(%arg0: i32) -> (i32, i32) {
    %c0_i32 = arith.constant 0 : i32
    %c0_i32_0 = arith.constant 0 : i32
    return %arg0, %c0_i32 : i32, i32
  }
}

</mosaic_0001>

<llo_original>
// kernel: tpu_custom_call.1
$region0: #{tpu_custom_call.1}
  #allocation0 [shape = 'u32[]', space=smem, size = 0x4, offset = 0x4, fixed_abs, tag = 'smem constant byte address 0x4 - core index']
  #allocation1 [shape = 'u32[72,128]{1,0:T(1,128)}', space=vmem, size = 0x9000, scoped, tag = 'internal scratch']
  %s0 = inlined_call_operand.vmem [shape: f32[8,1], index: 0, kind: input, shape index: {}]
  %s1 = inlined_call_operand.vmem [shape: f32[1,128], index: 1, kind: input, shape index: {}]
  %s2 = inlined_call_operand.hbm [shape: bf16[128,256], index: 2, kind: input, shape index: {}]
  %s3 = inlined_call_operand.vmem [shape: f32[1,256], index: 3, kind: input, shape index: {}]
  %s4 = inlined_call_operand.hbm [shape: bf16[256,256], index: 4, kind: input, shape index: {}]
  %s5 = inlined_call_operand.vmem [shape: f32[1,256], index: 5, kind: input, shape index: {}]
  %s6 = inlined_call_operand.hbm [shape: f32[8,256], index: 6, kind: output, shape index: {}]
  %s7 = sld [smem:[#allocation0]]
  $region42: #{tpu_custom_call.1} parent=0
    _
  %s9 = ssub.s32 1, %s7
  %s10 = scalar_select 0, %s9, %s7
  $region1: #{tpu_custom_call.1} parent=0
    #allocation2 [shape = 'u8[65536]{0}', space=vmem, size = 0x10000, scoped, tag = 'input window, operand 2, single buffered']
    #allocation3 [shape = 's32[1]{0}', space=sflag, size = 0x4, scoped, tag = 'scoped memory for tpu_custom_call.1']
    #allocation4 [shape = 's32[1]{0}', space=sflag, size = 0x4, scoped, tag = 'scoped memory for tpu_custom_call.1']
    #allocation5 [shape = 'u8[131072]{0}', space=vmem, size = 0x20000, scoped, tag = 'input window, operand 4, single buffered']
    #allocation6 [shape = 's32[1]{0}', space=sflag, size = 0x4, scoped, tag = 'scoped memory for tpu_custom_call.1']
    #allocation7 [shape = 'u8[8192]{0}', space=vmem, size = 0x2000, scoped, tag = 'output window, operand 0, single buffered']
    %11 = vsyncpa [#allocation3], 0
    %12 = vsyncpa [#allocation6], 0
    %13 = vsyncpa [#allocation4], 0
    // Predicated region
    $region2: #{tpu_custom_call.1} parent=1 // pred_check
      _
    $region3: #{tpu_custom_call.1} parent=1 // pred_check_branch
      %15 = sbr.rel (0) target = $region5
    $region4: #{tpu_custom_call.1} parent=1 // pred_region
      _
    $region5: #{tpu_custom_call.1} parent=1 // pred_fallthru
      _
    // Predicated region
    $region6: #{tpu_custom_call.1} parent=1 // pred_check
      _
    $region7: #{tpu_custom_call.1} parent=1 // pred_check_branch
      %17 = sbr.rel (0) target = $region9
    $region8: #{tpu_custom_call.1} parent=1 // pred_region
      _
    $region9: #{tpu_custom_call.1} parent=1 // pred_fallthru
      _
    // Predicated region
    $region10: #{tpu_custom_call.1} parent=1 // pred_check
      _
    $region11: #{tpu_custom_call.1} parent=1 // pred_check_branch
      %19 = sbr.rel (0) target = $region13
    $region12: #{tpu_custom_call.1} parent=1 // pred_region
      %21 = vsyncadd [#allocation3], 0
      %s22 = sshll.u32 %s2, 4
      %s23 = int_to_ptr.hbm [resolvable:$true] %s22
      %s24 = sshll.u32 [#allocation2], 4
      %s25 = int_to_ptr.vmem [resolvable:$true] %s24
      %30 = dma.hbm_to_vmem [thread:$0]  %s23, 2048, %s25, [#allocation3], 128, 128, 8
    $region13: #{tpu_custom_call.1} parent=1 // pred_fallthru
      _
    // Predicated region
    $region14: #{tpu_custom_call.1} parent=1 // pred_check
      _
    $region15: #{tpu_custom_call.1} parent=1 // pred_check_branch
      %32 = sbr.rel (0) target = $region17
    $region16: #{tpu_custom_call.1} parent=1 // pred_region
      _
    $region17: #{tpu_custom_call.1} parent=1 // pred_fallthru
      _
    // Predicated region
    $region18: #{tpu_custom_call.1} parent=1 // pred_check
      _
    $region19: #{tpu_custom_call.1} parent=1 // pred_check_branch
      %34 = sbr.rel (0) target = $region21
    $region20: #{tpu_custom_call.1} parent=1 // pred_region
      %36 = vsyncadd [#allocation6], 0
      %s37 = sshll.u32 %s4, 4
      %s38 = int_to_ptr.hbm [resolvable:$true] %s37
      %s39 = sshll.u32 [#allocation5], 4
      %s40 = int_to_ptr.vmem [resolvable:$true] %s39
      %45 = dma.hbm_to_vmem [thread:$0]  %s38, 4096, %s40, [#allocation6], 128, 128, 8
    $region21: #{tpu_custom_call.1} parent=1 // pred_fallthru
      _
    // Predicated region
    $region22: #{tpu_custom_call.1} parent=1 // pred_check
      _
    $region23: #{tpu_custom_call.1} parent=1 // pred_check_branch
      %47 = sbr.rel (0) target = $region25
    $region24: #{tpu_custom_call.1} parent=1 // pred_region
      _
    $region25: #{tpu_custom_call.1} parent=1 // pred_fallthru
      _
    // Predicated region
    $region26: #{tpu_custom_call.1} parent=1 // pred_check
      _
    $region27: #{tpu_custom_call.1} parent=1 // pred_check_branch
      %49 = sbr.rel (0) target = $region29
    $region28: #{tpu_custom_call.1} parent=1 // pred_region
      %51 = dma.done [#allocation3], 2048
    $region29: #{tpu_custom_call.1} parent=1 // pred_fallthru
      _
    // Predicated region
    $region30: #{tpu_custom_call.1} parent=1 // pred_check
      _
    $region31: #{tpu_custom_call.1} parent=1 // pred_check_branch
      %53 = sbr.rel (0) target = $region33
    $region32: #{tpu_custom_call.1} parent=1 // pred_region
      %55 = dma.done [#allocation6], 4096
    $region33: #{tpu_custom_call.1} parent=1 // pred_fallthru
      _
    %v56 = vld [vmem:[%s0] sm:$0xff]
    %v57 = vld [vmem:[%s1] sm:$0x1]
    %59 = vset.pattern.permute.xlu0 0
    %60 = vperm.xlu0 %59, %v56
    %v61 = vpop.permute.xlu0 %60
    %v64 = vperm.slane %v57, 0
    %v66 = vmul.f32 %v61, %v64
    %v67 = vlaneseq
    %v68 = vand.u32 %v67, 127
    %vm69 = vcmp.lt.s32.totalorder %v68, 64
    %v70 = vand.u32 2147483647, %v66
    %vm71 = vcmp.le.f32.partialorder %v70, 0.7853982
    %vm72 = vcmp.lt.s32.totalorder %v66, 0
    %v73 = vand.u32 %v66, 2139095040
    %v74 = vshrl.u32 %v73, 23
    %v75 = vsub.s32 %v74, 127
    %v76 = vand.u32 2147483647, %v66
    %v77 = vand.u32 %v76, 8388607
    %v78 = vor.u32 %v77, 8388608
    %v79 = vsub.s32 0, %v78
    %v80 = vadd.s32 %v75, 1
    %vm81 = vcmp.gt.s32.totalorder %v80, 0
    %v82 = vsel %vm81, %v80, 0
    %v83 = vshrl.u32 %v82, 5
    %v84 = vand.u32 %v82, 31
    %v85 = vsub.s32 32, %v84
    %v86 = vshrl.u32 683565275, %v85
    %v87 = vshll.u32 683565275, %v84
    %v88 = vshrl.u32 2475754826, %v85
    %v89 = vor.u32 %v87, %v88
    %v90 = vshll.u32 2475754826, %v84
    %v91 = vshrl.u32 2131351028, %v85
    %v92 = vor.u32 %v90, %v91
    %v93 = vshll.u32 2131351028, %v84
    %v94 = vshrl.u32 2102212464, %v85
    %v95 = vor.u32 %v93, %v94
    %v96 = vshll.u32 2102212464, %v84
    %v97 = vshrl.u32 920167782, %v85
    %v98 = vor.u32 %v96, %v97
    %v99 = vshll.u32 920167782, %v84
    %v100 = vshrl.u32 1326507024, %v85
    %v101 = vor.u32 %v99, %v100
    %vm102 = vcmp.lt.s32.totalorder %v83, 1
    %vm103 = vcmp.lt.s32.totalorder %v83, 2
    %vm104 = vcmp.lt.s32.totalorder %v83, 3
    %vm105 = vcmp.lt.s32.totalorder %v83, 4
    %v106 = vsel %vm102, %v86, %v89
    %v107 = vsel %vm105, %v95, 2102212464
    %v108 = vsel %vm104, %v92, %v107
    %v109 = vsel %vm103, %v106, %v108
    %v110 = vsel %vm102, %v89, %v92
    %v111 = vsel %vm105, %v98, 920167782
    %v112 = vsel %vm104, %v95, %v111
    %v113 = vsel %vm103, %v110, %v112
    %v114 = vsel %vm102, %v92, %v95
    %v115 = vsel %vm105, %v101, 1326507024
    %v116 = vsel %vm104, %v98, %v115
    %v117 = vsel %vm103, %v114, %v116
    %v118 = vshll.u32 %v78, 8
    %v119 = vand.u32 %v118, 65535
    %v120 = vshrl.u32 %v118, 16
    %v121 = vand.u32 %v117, 65535
    %v122 = vshrl.u32 %v117, 16
    %v123 = vmul.u32 %v119, %v121
    %v124 = vmul.u32 %v119, %v122
    %v125 = vmul.u32 %v120, %v121
    %v126 = vmul.u32 %v120, %v122
    %v127 = vshll.u32 %v124, 16
    %v128 = vshrl.u32 %v124, 16
    %v129 = vshll.u32 %v125, 16
    %v130 = vshrl.u32 %v125, 16
    %vm131 = vc.u32 %v123, %v127
    %v132 = vsel %vm131, 1, 0
    %v133 = vadd.s32 %v123, %v127
    %v134 = vadd.s32 %v126, %v132
    %vm135 = vc.u32 %v133, %v129
    %v136 = vsel %vm135, 1, 0
    %v137 = vadd.s32 %v133, %v129
    %v138 = vadd.s32 %v134, %v136
    %v139 = vadd.s32 %v138, %v128
    %v140 = vadd.s32 %v139, %v130
    %v141 = vand.u32 %v118, 65535
    %v142 = vshrl.u32 %v118, 16
    %v143 = vand.u32 %v113, 65535
    %v144 = vshrl.u32 %v113, 16
    %v145 = vmul.u32 %v141, %v143
    %v146 = vmul.u32 %v141, %v144
    %v147 = vmul.u32 %v142, %v143
    %v148 = vmul.u32 %v142, %v144
    %v149 = vshll.u32 %v146, 16
    %v150 = vshrl.u32 %v146, 16
    %v151 = vshll.u32 %v147, 16
    %v152 = vshrl.u32 %v147, 16
    %vm153 = vc.u32 %v145, %v149
    %v154 = vsel %vm153, 1, 0
    %v155 = vadd.s32 %v145, %v149
    %v156 = vadd.s32 %v148, %v154
    %vm157 = vc.u32 %v155, %v151
    %v158 = vsel %vm157, 1, 0
    %v159 = vadd.s32 %v155, %v151
    %v160 = vadd.s32 %v156, %v158
    %v161 = vadd.s32 %v160, %v150
    %v162 = vadd.s32 %v161, %v152
    %v163 = vmul.u32 %v118, %v109
    %v164 = vadd.s32 %v140, %v159
    %vm165 = vc.u32 %v140, %v159
    %v166 = vadd.s32 %v162, 1
    %v167 = vsel %vm165, %v166, %v162
    %v168 = vadd.s32 %v163, %v167
    %v169 = vadd.s32 %v168, 536870912
    %v170 = vshrl.u32 %v169, 30
    %v171 = vshll.u32 %v170, 30
    %v172 = vsub.s32 %v168, %v171
    %vm173 = vcmp.lt.s32.totalorder %v172, 0
    %v174 = vsub.s32 0, %v172
    %v175 = vsel %vm173, %v174, %v172
    %v176 = vclz %v175
    %v177 = vsub.s32 %v176, 2
    %vm178 = vcmp.gt.s32.totalorder 0, %v177
    %v179 = vsel %vm178, 0, %v177
    %v180 = vsub.s32 32, %v179
    %v181 = vshll.u32 %v172, %v179
    %v182 = vshrl.u32 %v164, %v180
    %v183 = vor.u32 %v181, %v182
    %v184 = vsub.s32 4294967266, %v179
    %v185 = vadd.s32 %v184, 127
    %v186 = vshll.u32 %v185, 23
    %v187 = vor.u32 4788187, %v186
    %v188 = vand.u32 2147483647, %v187
    %v190 = vcvt.s32.f32 %v183
    %v191 = vmul.f32 %v190, %v188
    %v192 = vxor.u32 %v191, 2147483648
    %v193 = vsel %vm72, %v192, %v191
    %v194 = vsub.s32 4, %v170
    %v195 = vsel %vm72, %v194, %v170
    %v196 = vsel %vm71, %v66, %v193
    %v197 = vsel %vm71, 0, %v195
    %v198 = vmul.f32 %v196, %v196
    %v199 = vmul.f32 %v198, -0.001358992
    %v200 = vadd.f32 %v199, 0.041655596
    %v201 = vmul.f32 %v198, %v200
    %v202 = vadd.f32 %v201, -0.4999988
    %v203 = vmul.f32 %v198, %v202
    %v204 = vadd.f32 1.0, %v203
    %v205 = vmul.f32 %v196, %v196
    %v206 = vmul.f32 %v205, -0.00019511016
    %v207 = vadd.f32 %v206, 0.008332121
    %v208 = vmul.f32 %v205, %v207
    %v209 = vadd.f32 %v208, -0.16666654
    %v210 = vmul.f32 %v205, %v209
    %v211 = vadd.f32 %v210, 1.0
    %v212 = vmul.f32 %v211, %v196
    %vm213 = vweird.f32 %v66
    %v214 = vadd.s32 %v197, 3
    %v215 = vand.u32 %v214, 3
    %vm216 = vcmp.lt.s32.totalorder %v215, 2
    %vm217 = vcmp.eq.s32.totalorder %v215, 0
    %v218 = vxor.u32 %v212, 2147483648
    %v219 = vsel %vm217, %v204, %v218
    %vm220 = vcmp.eq.s32.totalorder %v215, 2
    %v221 = vxor.u32 %v204, 2147483648
    %v222 = vsel %vm220, %v221, %v212
    %v223 = vsel %vm216, %v219, %v222
    %v224 = vsel %vm213, nan, %v223
    %v225 = vand.u32 2147483647, %v66
    %vm226 = vcmp.le.f32.partialorder %v225, 0.7853982
    %vm227 = vcmp.lt.s32.totalorder %v66, 0
    %v228 = vand.u32 %v66, 2139095040
    %v229 = vshrl.u32 %v228, 23
    %v230 = vsub.s32 %v229, 127
    %v231 = vand.u32 2147483647, %v66
    %v232 = vand.u32 %v231, 8388607
    %v233 = vor.u32 %v232, 8388608
    %v234 = vsub.s32 0, %v233
    %v235 = vadd.s32 %v230, 1
    %vm236 = vcmp.gt.s32.totalorder %v235, 0
    %v237 = vsel %vm236, %v235, 0
    %v238 = vshrl.u32 %v237, 5
    %v239 = vand.u32 %v237, 31
    %v240 = vsub.s32 32, %v239
    %v241 = vshrl.u32 683565275, %v240
    %v242 = vshll.u32 683565275, %v239
    %v243 = vshrl.u32 2475754826, %v240
    %v244 = vor.u32 %v242, %v243
    %v245 = vshll.u32 2475754826, %v239
    %v246 = vshrl.u32 2131351028, %v240
    %v247 = vor.u32 %v245, %v246
    %v248 = vshll.u32 2131351028, %v239
    %v249 = vshrl.u32 2102212464, %v240
    %v250 = vor.u32 %v248, %v249
    %v251 = vshll.u32 2102212464, %v239
    %v252 = vshrl.u32 920167782, %v240
    %v253 = vor.u32 %v251, %v252
    %v254 = vshll.u32 920167782, %v239
    %v255 = vshrl.u32 1326507024, %v240
    %v256 = vor.u32 %v254, %v255
    %vm257 = vcmp.lt.s32.totalorder %v238, 1
    %vm258 = vcmp.lt.s32.totalorder %v238, 2
    %vm259 = vcmp.lt.s32.totalorder %v238, 3
    %vm260 = vcmp.lt.s32.totalorder %v238, 4
    %v261 = vsel %vm257, %v241, %v244
    %v262 = vsel %vm260, %v250, 2102212464
    %v263 = vsel %vm259, %v247, %v262
    %v264 = vsel %vm258, %v261, %v263
    %v265 = vsel %vm257, %v244, %v247
    %v266 = vsel %vm260, %v253, 920167782
    %v267 = vsel %vm259, %v250, %v266
    %v268 = vsel %vm258, %v265, %v267
    %v269 = vsel %vm257, %v247, %v250
    %v270 = vsel %vm260, %v256, 1326507024
    %v271 = vsel %vm259, %v253, %v270
    %v272 = vsel %vm258, %v269, %v271
    %v273 = vshll.u32 %v233, 8
    %v274 = vand.u32 %v273, 65535
    %v275 = vshrl.u32 %v273, 16
    %v276 = vand.u32 %v272, 65535
    %v277 = vshrl.u32 %v272, 16
    %v278 = vmul.u32 %v274, %v276
    %v279 = vmul.u32 %v274, %v277
    %v280 = vmul.u32 %v275, %v276
    %v281 = vmul.u32 %v275, %v277
    %v282 = vshll.u32 %v279, 16
    %v283 = vshrl.u32 %v279, 16
    %v284 = vshll.u32 %v280, 16
    %v285 = vshrl.u32 %v280, 16
    %vm286 = vc.u32 %v278, %v282
    %v287 = vsel %vm286, 1, 0
    %v288 = vadd.s32 %v278, %v282
    %v289 = vadd.s32 %v281, %v287
    %vm290 = vc.u32 %v288, %v284
    %v291 = vsel %vm290, 1, 0
    %v292 = vadd.s32 %v288, %v284
    %v293 = vadd.s32 %v289, %v291
    %v294 = vadd.s32 %v293, %v283
    %v295 = vadd.s32 %v294, %v285
    %v296 = vand.u32 %v273, 65535
    %v297 = vshrl.u32 %v273, 16
    %v298 = vand.u32 %v268, 65535
    %v299 = vshrl.u32 %v268, 16
    %v300 = vmul.u32 %v296, %v298
    %v301 = vmul.u32 %v296, %v299
    %v302 = vmul.u32 %v297, %v298
    %v303 = vmul.u32 %v297, %v299
    %v304 = vshll.u32 %v301, 16
    %v305 = vshrl.u32 %v301, 16
    %v306 = vshll.u32 %v302, 16
    %v307 = vshrl.u32 %v302, 16
    %vm308 = vc.u32 %v300, %v304
    %v309 = vsel %vm308, 1, 0
    %v310 = vadd.s32 %v300, %v304
    %v311 = vadd.s32 %v303, %v309
    %vm312 = vc.u32 %v310, %v306
    %v313 = vsel %vm312, 1, 0
    %v314 = vadd.s32 %v310, %v306
    %v315 = vadd.s32 %v311, %v313
    %v316 = vadd.s32 %v315, %v305
    %v317 = vadd.s32 %v316, %v307
    %v318 = vmul.u32 %v273, %v264
    %v319 = vadd.s32 %v295, %v314
    %vm320 = vc.u32 %v295, %v314
    %v321 = vadd.s32 %v317, 1
    %v322 = vsel %vm320, %v321, %v317
    %v323 = vadd.s32 %v318, %v322
    %v324 = vadd.s32 %v323, 536870912
    %v325 = vshrl.u32 %v324, 30
    %v326 = vshll.u32 %v325, 30
    %v327 = vsub.s32 %v323, %v326
    %vm328 = vcmp.lt.s32.totalorder %v327, 0
    %v329 = vsub.s32 0, %v327
    %v330 = vsel %vm328, %v329, %v327
    %v331 = vclz %v330
    %v332 = vsub.s32 %v331, 2
    %vm333 = vcmp.gt.s32.totalorder 0, %v332
    %v334 = vsel %vm333, 0, %v332
    %v335 = vsub.s32 32, %v334
    %v336 = vshll.u32 %v327, %v334
    %v337 = vshrl.u32 %v319, %v335
    %v338 = vor.u32 %v336, %v337
    %v339 = vsub.s32 4294967266, %v334
    %v340 = vadd.s32 %v339, 127
    %v341 = vshll.u32 %v340, 23
    %v342 = vor.u32 4788187, %v341
    %v343 = vand.u32 2147483647, %v342
    %v345 = vcvt.s32.f32 %v338
    %v346 = vmul.f32 %v345, %v343
    %v347 = vxor.u32 %v346, 2147483648
    %v348 = vsel %vm227, %v347, %v346
    %v349 = vsub.s32 4, %v325
    %v350 = vsel %vm227, %v349, %v325
    %v351 = vsel %vm226, %v66, %v348
    %v352 = vsel %vm226, 0, %v350
    %v353 = vmul.f32 %v351, %v351
    %v354 = vmul.f32 %v353, -0.001358992
    %v355 = vadd.f32 %v354, 0.041655596
    %v356 = vmul.f32 %v353, %v355
    %v357 = vadd.f32 %v356, -0.4999988
    %v358 = vmul.f32 %v353, %v357
    %v359 = vadd.f32 1.0, %v358
    %v360 = vmul.f32 %v351, %v351
    %v361 = vmul.f32 %v360, -0.00019511016
    %v362 = vadd.f32 %v361, 0.008332121
    %v363 = vmul.f32 %v360, %v362
    %v364 = vadd.f32 %v363, -0.16666654
    %v365 = vmul.f32 %v360, %v364
    %v366 = vadd.f32 %v365, 1.0
    %v367 = vmul.f32 %v366, %v351
    %vm368 = vweird.f32 %v66
    %v369 = vand.u32 %v352, 3
    %vm370 = vcmp.lt.s32.totalorder %v369, 2
    %vm371 = vcmp.eq.s32.totalorder %v369, 0
    %v372 = vxor.u32 %v367, 2147483648
    %v373 = vsel %vm371, %v359, %v372
    %vm374 = vcmp.eq.s32.totalorder %v369, 2
    %v375 = vxor.u32 %v359, 2147483648
    %v376 = vsel %vm374, %v375, %v367
    %v377 = vsel %vm370, %v373, %v376
    %v378 = vsel %vm368, nan, %v377
    %v379 = vsel %vm69, %v224, %v378
    %v380 = vpack.c.bf16 %v379, %v379
    %v381 = vld [vmem:[#allocation2] sm:$0xff]
    %v382 = vld [vmem:[#allocation2 + $0x8] sm:$0xff]
    %v383 = vld [vmem:[#allocation2 + $0x10] sm:$0xff]
    %v384 = vld [vmem:[#allocation2 + $0x18] sm:$0xff]
    %v385 = vld [vmem:[#allocation2 + $0x20] sm:$0xff]
    %v386 = vld [vmem:[#allocation2 + $0x28] sm:$0xff]
    %v387 = vld [vmem:[#allocation2 + $0x30] sm:$0xff]
    %v388 = vld [vmem:[#allocation2 + $0x38] sm:$0xff]
    %v389 = vld [vmem:[#allocation2 + $0x40] sm:$0xff]
    %v390 = vld [vmem:[#allocation2 + $0x48] sm:$0xff]
    %v391 = vld [vmem:[#allocation2 + $0x50] sm:$0xff]
    %v392 = vld [vmem:[#allocation2 + $0x58] sm:$0xff]
    %v393 = vld [vmem:[#allocation2 + $0x60] sm:$0xff]
    %v394 = vld [vmem:[#allocation2 + $0x68] sm:$0xff]
    %v395 = vld [vmem:[#allocation2 + $0x70] sm:$0xff]
    %v396 = vld [vmem:[#allocation2 + $0x78] sm:$0xff]
    %v397 = vld [vmem:[%s3] sm:$0x3]
    %v399 = vperm.slane %v397, 0
    %v400 = vperm.slane %v397, 1
    %v419 = vunpack.c.l.b16 %v381
    %v420 = vunpack.c.h.b16 %v381
    %v421 = vunpack.c.l.b16 %v382
    %v422 = vunpack.c.h.b16 %v382
    %v423 = vunpack.c.l.b16 %v383
    %v424 = vunpack.c.h.b16 %v383
    %v425 = vunpack.c.l.b16 %v384
    %v426 = vunpack.c.h.b16 %v384
    %v427 = vunpack.c.l.b16 %v385
    %v428 = vunpack.c.h.b16 %v385
    %v429 = vunpack.c.l.b16 %v386
    %v430 = vunpack.c.h.b16 %v386
    %v431 = vunpack.c.l.b16 %v387
    %v432 = vunpack.c.h.b16 %v387
    %v433 = vunpack.c.l.b16 %v388
    %v434 = vunpack.c.h.b16 %v388
    %v435 = vunpack.c.l.b16 %v389
    %v436 = vunpack.c.h.b16 %v389
    %v437 = vunpack.c.l.b16 %v390
    %v438 = vunpack.c.h.b16 %v390
    %v439 = vunpack.c.l.b16 %v391
    %v440 = vunpack.c.h.b16 %v391
    %v441 = vunpack.c.l.b16 %v392
    %v442 = vunpack.c.h.b16 %v392
    %v443 = vunpack.c.l.b16 %v393
    %v444 = vunpack.c.h.b16 %v393
    %v445 = vunpack.c.l.b16 %v394
    %v446 = vunpack.c.h.b16 %v394
    %v447 = vunpack.c.l.b16 %v395
    %v448 = vunpack.c.h.b16 %v395
    %v449 = vunpack.c.l.b16 %v396
    %v450 = vunpack.c.h.b16 %v396
    %v451 = vpack.c.b16 %v421, %v419
    %v452 = vpack.c.b16 %v422, %v420
    %v453 = vpack.c.b16 %v425, %v423
    %v454 = vpack.c.b16 %v426, %v424
    %v455 = vpack.c.b16 %v429, %v427
    %v456 = vpack.c.b16 %v430, %v428
    %v457 = vpack.c.b16 %v433, %v431
    %v458 = vpack.c.b16 %v434, %v432
    %v459 = vpack.c.b16 %v437, %v435
    %v460 = vpack.c.b16 %v438, %v436
    %v461 = vpack.c.b16 %v441, %v439
    %v462 = vpack.c.b16 %v442, %v440
    %v463 = vpack.c.b16 %v445, %v443
    %v464 = vpack.c.b16 %v446, %v444
    %v465 = vpack.c.b16 %v449, %v447
    %v466 = vpack.c.b16 %v450, %v448
    %483 = vmatpush.bf16.msra.mxu0 %v465
    %484 = vmatpush.bf16.msra.mxu0 %v463
    %485 = vmatpush.bf16.msra.mxu0 %v461
    %486 = vmatpush.bf16.msra.mxu0 %v459
    %487 = vmatpush.bf16.msra.mxu0 %v457
    %488 = vmatpush.bf16.msra.mxu0 %v455
    %489 = vmatpush.bf16.msra.mxu0 %v453
    %490 = vmatpush.bf16.msra.mxu0 %v451
    %491 = vmatmul.bf16.gmra.mxu0 %v380
    %v492 = vpop.f32.mrf.mxu0
    %v493 = vadd.f32 %v399, %v492
    %v494 = vpop.f32.mrf.mxu0
    %495 = vdwg.mxu0
    %496 = vmatpush.bf16.msra.mxu0 %v466
    %497 = vmatpush.bf16.msra.mxu0 %v464
    %498 = vmatpush.bf16.msra.mxu0 %v462
    %499 = vmatpush.bf16.msra.mxu0 %v460
    %500 = vmatpush.bf16.msra.mxu0 %v458
    %501 = vmatpush.bf16.msra.mxu0 %v456
    %502 = vmatpush.bf16.msra.mxu0 %v454
    %503 = vmatpush.bf16.msra.mxu0 %v452
    %504 = vmatmul.bf16.gmra.mxu0 %v380
    %v505 = vpop.f32.mrf.mxu0
    %v506 = vadd.f32 %v400, %v505
    %v507 = vpop.f32.mrf.mxu0
    %508 = vdwg.mxu0
    %v509 = vsub.f32 0.0, %v493
    %v510 = vsub.f32 0.0, %v506
    %v511 = vmul.f32 %v509, 1.442695
    %v512 = vpow.pop %v511
    %v513 = vmul.f32 %v510, 1.442695
    %v514 = vpow.pop %v513
    %v515 = vadd.f32 %v512, 1.0
    %v516 = vadd.f32 %v514, 1.0
    %v517 = vrcp.pop %v515
    %v518 = vrcp.pop %v516
    %v519 = vmul.f32 %v493, %v517
    %v520 = vmul.f32 %v506, %v518
    %v521 = vpack.c.bf16 %v519, %v519
    %v522 = vpack.c.bf16 %v520, %v520
    %v523 = vld [vmem:[#allocation5] sm:$0xff]
    %v524 = vld [vmem:[#allocation5 + $0x8] sm:$0xff]
    %v525 = vld [vmem:[#allocation5 + $0x10] sm:$0xff]
    %v526 = vld [vmem:[#allocation5 + $0x18] sm:$0xff]
    %v527 = vld [vmem:[#allocation5 + $0x20] sm:$0xff]
    %v528 = vld [vmem:[#allocation5 + $0x28] sm:$0xff]
    %v529 = vld [vmem:[#allocation5 + $0x30] sm:$0xff]
    %v530 = vld [vmem:[#allocation5 + $0x38] sm:$0xff]
    %v531 = vld [vmem:[#allocation5 + $0x40] sm:$0xff]
    %v532 = vld [vmem:[#allocation5 + $0x48] sm:$0xff]
    %v533 = vld [vmem:[#allocation5 + $0x50] sm:$0xff]
    %v534 = vld [vmem:[#allocation5 + $0x58] sm:$0xff]
    %v535 = vld [vmem:[#allocation5 + $0x60] sm:$0xff]
    %v536 = vld [vmem:[#allocation5 + $0x68] sm:$0xff]
    %v537 = vld [vmem:[#allocation5 + $0x70] sm:$0xff]
    %v538 = vld [vmem:[#allocation5 + $0x78] sm:$0xff]
    %v539 = vld [vmem:[#allocation5 + $0x80] sm:$0xff]
    %v540 = vld [vmem:[#allocation5 + $0x88] sm:$0xff]
    %v541 = vld [vmem:[#allocation5 + $0x90] sm:$0xff]
    %v542 = vld [vmem:[#allocation5 + $0x98] sm:$0xff]
    %v543 = vld [vmem:[#allocation5 + $0xa0] sm:$0xff]
    %v544 = vld [vmem:[#allocation5 + $0xa8] sm:$0xff]
    %v545 = vld [vmem:[#allocation5 + $0xb0] sm:$0xff]
    %v546 = vld [vmem:[#allocation5 + $0xb8] sm:$0xff]
    %v547 = vld [vmem:[#allocation5 + $0xc0] sm:$0xff]
    %v548 = vld [vmem:[#allocation5 + $0xc8] sm:$0xff]
    %v549 = vld [vmem:[#allocation5 + $0xd0] sm:$0xff]
    %v550 = vld [vmem:[#allocation5 + $0xd8] sm:$0xff]
    %v551 = vld [vmem:[#allocation5 + $0xe0] sm:$0xff]
    %v552 = vld [vmem:[#allocation5 + $0xe8] sm:$0xff]
    %v553 = vld [vmem:[#allocation5 + $0xf0] sm:$0xff]
    %v554 = vld [vmem:[#allocation5 + $0xf8] sm:$0xff]
    %v555 = vld [vmem:[%s5] sm:$0x3]
    %v557 = vperm.slane %v555, 0
    %v558 = vperm.slane %v555, 1
    %v593 = vunpack.c.l.b16 %v523
    %v594 = vunpack.c.h.b16 %v523
    %v595 = vunpack.c.l.b16 %v524
    %v596 = vunpack.c.h.b16 %v524
    %v597 = vunpack.c.l.b16 %v525
    %v598 = vunpack.c.h.b16 %v525
    %v599 = vunpack.c.l.b16 %v526
    %v600 = vunpack.c.h.b16 %v526
    %v601 = vunpack.c.l.b16 %v527
    %v602 = vunpack.c.h.b16 %v527
    %v603 = vunpack.c.l.b16 %v528
    %v604 = vunpack.c.h.b16 %v528
    %v605 = vunpack.c.l.b16 %v529
    %v606 = vunpack.c.h.b16 %v529
    %v607 = vunpack.c.l.b16 %v530
    %v608 = vunpack.c.h.b16 %v530
    %v609 = vunpack.c.l.b16 %v531
    %v610 = vunpack.c.h.b16 %v531
    %v611 = vunpack.c.l.b16 %v532
    %v612 = vunpack.c.h.b16 %v532
    %v613 = vunpack.c.l.b16 %v533
    %v614 = vunpack.c.h.b16 %v533
    %v615 = vunpack.c.l.b16 %v534
    %v616 = vunpack.c.h.b16 %v534
    %v617 = vunpack.c.l.b16 %v535
    %v618 = vunpack.c.h.b16 %v535
    %v619 = vunpack.c.l.b16 %v536
    %v620 = vunpack.c.h.b16 %v536
    %v621 = vunpack.c.l.b16 %v537
    %v622 = vunpack.c.h.b16 %v537
    %v623 = vunpack.c.l.b16 %v538
    %v624 = vunpack.c.h.b16 %v538
    %v625 = vunpack.c.l.b16 %v539
    %v626 = vunpack.c.h.b16 %v539
    %v627 = vunpack.c.l.b16 %v540
    %v628 = vunpack.c.h.b16 %v540
    %v629 = vunpack.c.l.b16 %v541
    %v630 = vunpack.c.h.b16 %v541
    %v631 = vunpack.c.l.b16 %v542
    %v632 = vunpack.c.h.b16 %v542
    %v633 = vunpack.c.l.b16 %v543
    %v634 = vunpack.c.h.b16 %v543
    %v635 = vunpack.c.l.b16 %v544
    %v636 = vunpack.c.h.b16 %v544
    %v637 = vunpack.c.l.b16 %v545
    %v638 = vunpack.c.h.b16 %v545
    %v639 = vunpack.c.l.b16 %v546
    %v640 = vunpack.c.h.b16 %v546
    %v641 = vunpack.c.l.b16 %v547
    %v642 = vunpack.c.h.b16 %v547
    %v643 = vunpack.c.l.b16 %v548
    %v644 = vunpack.c.h.b16 %v548
    %v645 = vunpack.c.l.b16 %v549
    %v646 = vunpack.c.h.b16 %v549
    %v647 = vunpack.c.l.b16 %v550
    %v648 = vunpack.c.h.b16 %v550
    %v649 = vunpack.c.l.b16 %v551
    %v650 = vunpack.c.h.b16 %v551
    %v651 = vunpack.c.l.b16 %v552
    %v652 = vunpack.c.h.b16 %v552
    %v653 = vunpack.c.l.b16 %v553
    %v654 = vunpack.c.h.b16 %v553
    %v655 = vunpack.c.l.b16 %v554
    %v656 = vunpack.c.h.b16 %v554
    %v657 = vpack.c.b16 %v595, %v593
    %v658 = vpack.c.b16 %v596, %v594
    %v659 = vpack.c.b16 %v599, %v597
    %v660 = vpack.c.b16 %v600, %v598
    %v661 = vpack.c.b16 %v603, %v601
    %v662 = vpack.c.b16 %v604, %v602
    %v663 = vpack.c.b16 %v607, %v605
    %v664 = vpack.c.b16 %v608, %v606
    %v665 = vpack.c.b16 %v611, %v609
    %v666 = vpack.c.b16 %v612, %v610
    %v667 = vpack.c.b16 %v615, %v613
    %v668 = vpack.c.b16 %v616, %v614
    %v669 = vpack.c.b16 %v619, %v617
    %v670 = vpack.c.b16 %v620, %v618
    %v671 = vpack.c.b16 %v623, %v621
    %v672 = vpack.c.b16 %v624, %v622
    %v673 = vpack.c.b16 %v627, %v625
    %v674 = vpack.c.b16 %v628, %v626
    %v675 = vpack.c.b16 %v631, %v629
    %v676 = vpack.c.b16 %v632, %v630
    %v677 = vpack.c.b16 %v635, %v633
    %v678 = vpack.c.b16 %v636, %v634
    %v679 = vpack.c.b16 %v639, %v637
    %v680 = vpack.c.b16 %v640, %v638
    %v681 = vpack.c.b16 %v643, %v641
    %v682 = vpack.c.b16 %v644, %v642
    %v683 = vpack.c.b16 %v647, %v645
    %v684 = vpack.c.b16 %v648, %v646
    %v685 = vpack.c.b16 %v651, %v649
    %v686 = vpack.c.b16 %v652, %v650
    %v687 = vpack.c.b16 %v655, %v653
    %v688 = vpack.c.b16 %v656, %v654
    %721 = vmatpush.bf16.msra.mxu0 %v671
    %722 = vmatpush.bf16.msra.mxu0 %v669
    %723 = vmatpush.bf16.msra.mxu0 %v667
    %724 = vmatpush.bf16.msra.mxu0 %v665
    %725 = vmatpush.bf16.msra.mxu0 %v663
    %726 = vmatpush.bf16.msra.mxu0 %v661
    %727 = vmatpush.bf16.msra.mxu0 %v659
    %728 = vmatpush.bf16.msra.mxu0 %v657
    %729 = vmatmul.bf16.gmra.mxu0 %v521
    %v730 = vpop.f32.mrf.mxu0
    %v731 = vadd.f32 %v557, %v730
    %v732 = vpop.f32.mrf.mxu0
    %733 = vdwg.mxu0
    %734 = vmatpush.bf16.msra.mxu0 %v687
    %735 = vmatpush.bf16.msra.mxu0 %v685
    %736 = vmatpush.bf16.msra.mxu0 %v683
    %737 = vmatpush.bf16.msra.mxu0 %v681
    %738 = vmatpush.bf16.msra.mxu0 %v679
    %739 = vmatpush.bf16.msra.mxu0 %v677
    %740 = vmatpush.bf16.msra.mxu0 %v675
    %741 = vmatpush.bf16.msra.mxu0 %v673
    %742 = vmatmul.bf16.gmra.mxu0 %v522
    %v743 = vpop.f32.mrf.mxu0
    %v744 = vadd.f32 %v731, %v743
    %v745 = vpop.f32.mrf.mxu0
    %746 = vdwg.mxu0
    %747 = vmatpush.bf16.msra.mxu0 %v672
    %748 = vmatpush.bf16.msra.mxu0 %v670
    %749 = vmatpush.bf16.msra.mxu0 %v668
    %750 = vmatpush.bf16.msra.mxu0 %v666
    %751 = vmatpush.bf16.msra.mxu0 %v664
    %752 = vmatpush.bf16.msra.mxu0 %v662
    %753 = vmatpush.bf16.msra.mxu0 %v660
    %754 = vmatpush.bf16.msra.mxu0 %v658
    %755 = vmatmul.bf16.gmra.mxu0 %v521
    %v756 = vpop.f32.mrf.mxu0
    %v757 = vadd.f32 %v558, %v756
    %v758 = vpop.f32.mrf.mxu0
    %759 = vdwg.mxu0
    %760 = vmatpush.bf16.msra.mxu0 %v688
    %761 = vmatpush.bf16.msra.mxu0 %v686
    %762 = vmatpush.bf16.msra.mxu0 %v684
    %763 = vmatpush.bf16.msra.mxu0 %v682
    %764 = vmatpush.bf16.msra.mxu0 %v680
    %765 = vmatpush.bf16.msra.mxu0 %v678
    %766 = vmatpush.bf16.msra.mxu0 %v676
    %767 = vmatpush.bf16.msra.mxu0 %v674
    %768 = vmatmul.bf16.gmra.mxu0 %v522
    %v769 = vpop.f32.mrf.mxu0
    %v770 = vadd.f32 %v757, %v769
    %v771 = vpop.f32.mrf.mxu0
    %772 = vdwg.mxu0
    %v773 = vsub.f32 0.0, %v744
    %v774 = vsub.f32 0.0, %v770
    %v775 = vmul.f32 %v773, 1.442695
    %v776 = vpow.pop %v775
    %v777 = vmul.f32 %v774, 1.442695
    %v778 = vpow.pop %v777
    %v779 = vadd.f32 %v776, 1.0
    %v780 = vadd.f32 %v778, 1.0
    %v781 = vrcp.pop %v779
    %v782 = vrcp.pop %v780
    %v783 = vmul.f32 %v744, %v781
    %v784 = vmul.f32 %v770, %v782
    %785 = vst [vmem:[#allocation7] sm:$0xff] %v783
    %786 = vst [vmem:[#allocation7 + $0x8] sm:$0xff] %v784
    // Predicated region
    $region34: #{tpu_custom_call.1} parent=1 // pred_check
      _
    $region35: #{tpu_custom_call.1} parent=1 // pred_check_branch
      %788 = sbr.rel (0) target = $region37
    $region36: #{tpu_custom_call.1} parent=1 // pred_region
      %790 = vsyncadd [#allocation4], 0
      %s792 = sshll.u32 [#allocation7], 4
      %s793 = int_to_ptr.vmem [resolvable:$true] %s792
      %s794 = sshll.u32 %s6, 4
      %s795 = int_to_ptr.hbm [resolvable:$true] %s794
      %797 = dma.vmem_to_hbm [thread:$0]  %s793, 256, %s795, [#allocation4]
    $region37: #{tpu_custom_call.1} parent=1 // pred_fallthru
      _
    // Predicated region
    $region38: #{tpu_custom_call.1} parent=1 // pred_check
      _
    $region39: #{tpu_custom_call.1} parent=1 // pred_check_branch
      %799 = sbr.rel (0) target = $region41
    $region40: #{tpu_custom_call.1} parent=1 // pred_region
      %801 = dma.done [#allocation4], 256
    $region41: #{tpu_custom_call.1} parent=1 // pred_fallthru
      _
    %802 = vsyncpa [#allocation3], 1
    %803 = vsyncpa [#allocation6], 1
    %804 = vsyncpa [#allocation4], 1

</llo_original>
